<compile_context>
chip_gen: v6e
topology: v6e:2x2x1
jax: 0.10.0
libtpu: 0.0.40
codegen_flags: <defaults>
</compile_context>

<pallas_src>
import functools

import jax
import jax.numpy as jnp
from jax import lax
from jax.experimental import pallas as pl
from jax.experimental.pallas import tpu as pltpu

EPS = 1e-5


def _round_up(x, m):
    return (x + m - 1) // m * m


def _fold_groups(v, pack, e):
    """(1, pack*e) packed per-lane stats -> (1, e) per-feature totals."""
    tot = v[:, 0:e]
    for g in range(1, pack):
        tot = tot + v[:, g * e:(g + 1) * e]
    return tot


# ---------------------------------------------------------------------------
# Fused single-kernel path: whole (packed) batch resident in VMEM.
# ---------------------------------------------------------------------------
def _fused_kernel(x_ref, w1_ref, w2_ref, w3_ref,
                  g1_ref, b1_ref, g2_ref, b2_ref, g3_ref, b3_ref,
                  o_ref, *, n_valid, n_phys, pack, dims):
    e1, e2, e3 = dims
    pad = n_phys * pack - n_valid          # zero-padded logical rows (< pack)
    inv_n = 1.0 / n_valid

    def layer(h, w_ref, g_ref, b_ref, e, mask_h):
        # Block-diagonal packed matmul: output lane-group g only sees input
        # lane-group g, i.e. logical rows stay independent.
        y = jnp.dot(h, w_ref[...], preferred_element_type=jnp.float32)
        # Train-mode batch statistics, centered form (Y is VMEM resident so the
        # second pass over it is cheap and avoids E[x^2]-E[x]^2 cancellation).
        s = _fold_groups(jnp.sum(y, axis=0, keepdims=True), pack, e)
        mean = s * inv_n                                     # (1, e)
        mean_t = jnp.concatenate([mean] * pack, axis=1)      # (1, pack*e)
        d = y - mean_t
        q = _fold_groups(jnp.sum(d * d, axis=0, keepdims=True), pack, e)
        if pad:
            # Padded logical rows are exactly zero -> each added mean^2 to q.
            q = q - float(pad) * mean * mean
        var = jnp.maximum(q * inv_n, 0.0)
        scale = g_ref[...] * lax.rsqrt(var + EPS)            # (1, e)
        shift = b_ref[...] - mean * scale
        h_new = jnp.maximum(
            y * jnp.concatenate([scale] * pack, axis=1)
            + jnp.concatenate([shift] * pack, axis=1), 0.0)
        if mask_h and pad:
            # Zero padded logical rows so they cannot bias the next layer.
            row = lax.broadcasted_iota(jnp.int32, h_new.shape, 0)
            grp = lax.broadcasted_iota(jnp.int32, h_new.shape, 1) // e
            h_new = jnp.where(row * pack + grp < n_valid, h_new, 0.0)
        return h_new

    h1 = layer(x_ref[...], w1_ref, g1_ref, b1_ref, e1, True)
    h2 = layer(h1, w2_ref, g2_ref, b2_ref, e2, True)
    o_ref[...] = layer(h2, w3_ref, g3_ref, b3_ref, e3, False)


def _fused_forward(xp, wbds, bn, n, n_phys, pack, dims, vmem_limit):
    c0p = xp.shape[1]
    e1, e2, e3 = dims
    w1bd, w2bd, w3bd = wbds

    def full(shape):
        zeros = (0,) * len(shape)
        return pl.BlockSpec(shape, lambda i: zeros)

    flops = (2 * n_phys * pack * pack *
             ((c0p // pack) * e1 + e1 * e2 + e2 * e3)
             + 8 * n_phys * pack * (e1 + e2 + e3))
    return pl.pallas_call(
        functools.partial(_fused_kernel, n_valid=n, n_phys=n_phys, pack=pack,
                          dims=dims),
        grid=(1,),
        in_specs=[full((n_phys, c0p)),
                  full((c0p, pack * e1)),
                  full((pack * e1, pack * e2)),
                  full((pack * e2, pack * e3)),
                  full((1, e1)), full((1, e1)),
                  full((1, e2)), full((1, e2)),
                  full((1, e3)), full((1, e3))],
        out_specs=full((n_phys, pack * e3)),
        out_shape=jax.ShapeDtypeStruct((n_phys, pack * e3), jnp.float32),
        compiler_params=pltpu.CompilerParams(
            dimension_semantics=("arbitrary",), vmem_limit_bytes=vmem_limit),
        cost_estimate=pl.CostEstimate(
            flops=flops, transcendentals=3 * (e1 + e2 + e3),
            bytes_accessed=4 * n_phys * (c0p + pack * e3)),
    )(xp, w1bd, w2bd, w3bd, *bn)


# ---------------------------------------------------------------------------
# Tiled streaming fallback (large batches).
# ---------------------------------------------------------------------------
def _mm_stats_kernel(x_ref, w_ref, y_ref, sum_ref, ssq_ref):
    """Pass 1: packed X tile @ blockdiag(W1^T) -> packed Y1 tile + tile stats.

    Padded rows of X are zero and the Linear bias is dropped, so they add
    nothing to the statistics -- no masking needed here.
    """
    y = jnp.dot(x_ref[...], w_ref[...], preferred_element_type=jnp.float32)
    y_ref[...] = y
    sum_ref[0] = jnp.sum(y, axis=0, keepdims=True)
    ssq_ref[0] = jnp.sum(y * y, axis=0, keepdims=True)


def _norm_mm_stats_kernel(y_in_ref, sc_ref, sh_ref, w_ref,
                          y_out_ref, sum_ref, ssq_ref, *,
                          n_valid, pack, e_in, tile_rows, need_mask):
    """Folded-BN + ReLU of layer L fused with layer L+1's packed matmul,
    emitting per-tile partial sum / sum-of-squares of the new activation."""
    h = jnp.maximum(y_in_ref[...] * sc_ref[...] + sh_ref[...], 0.0)
    if need_mask:
        # Padded rows become relu(shift) != 0 after BN -> zero them before the
        # matmul so they cannot bias this layer's statistics.
        # TODO(synk): could be restricted to the last grid step only.
        row = lax.broadcasted_iota(jnp.int32, h.shape, 0)
        grp = lax.broadcasted_iota(jnp.int32, h.shape, 1) // e_in
        logical = (pl.program_id(0) * tile_rows + row) * pack + grp
        h = jnp.where(logical < n_valid, h, 0.0)
    y = jnp.dot(h, w_ref[...], preferred_element_type=jnp.float32)
    y_out_ref[...] = y
    sum_ref[0] = jnp.sum(y, axis=0, keepdims=True)
    ssq_ref[0] = jnp.sum(y * y, axis=0, keepdims=True)


def _norm_relu_kernel(y_ref, sc_ref, sh_ref, o_ref):
    """Final folded-BN + ReLU (written in place over Y3)."""
    o_ref[...] = jnp.maximum(y_ref[...] * sc_ref[...] + sh_ref[...], 0.0)


def _stats_to_scale_shift(part_sum, part_ssq, gamma, beta, pack, e, n):
    """Reduce per-tile packed partial stats -> folded BN scale/shift, tiled
    back to the packed lane layout (tiny XLA ops, once per layer)."""
    s = part_sum.reshape(-1, pack, e).sum(axis=(0, 1))
    q = part_ssq.reshape(-1, pack, e).sum(axis=(0, 1))
    mean = s / n
    var = jnp.maximum(q / n - mean * mean, 0.0)
    scale = gamma * lax.rsqrt(var + EPS)
    shift = beta - mean * scale
    return (jnp.tile(scale, pack).reshape(1, pack * e),
            jnp.tile(shift, pack).reshape(1, pack * e))


def _tiled_forward(xp, wbds, bn, n, pack, dims, tile_rows, vmem_limit):
    n_phys, c0p = xp.shape
    e1, e2, e3 = dims
    w1bd, w2bd, w3bd = wbds
    g1, b1, g2, b2, g3, b3 = bn

    tile = _round_up(min(tile_rows, _round_up(n_phys, 8)), 8)
    n_pad = _round_up(n_phys, tile)
    if n_pad != n_phys:
        # TODO(synk): a clipped (non-divisible) last block would avoid this pad
        # copy; kept explicit for robustness.
        xp = jnp.pad(xp, ((0, n_pad - n_phys), (0, 0)))
    grid = (n_pad // tile,)
    t = grid[0]
    need_mask = (n_pad * pack != n)

    cp = pltpu.CompilerParams(dimension_semantics=("parallel",),
                              vmem_limit_bytes=vmem_limit)

    def row_spec(width):
        return pl.BlockSpec((tile, width), lambda i: (i, 0))

    def stat_spec(width):
        return pl.BlockSpec((1, 1, width), lambda i: (i, 0, 0))

    def full(shape):
        zeros = (0,) * len(shape)
        return pl.BlockSpec(shape, lambda i: zeros)

    def stat_shape(width):
        return jax.ShapeDtypeStruct((t, 1, width), jnp.float32)

    # pass 1: Y1 = Xp @ blockdiag(W1^T), per-tile stats(Y1)
    y1, s1, q1 = pl.pallas_call(
        _mm_stats_kernel,
        grid=grid,
        in_specs=[row_spec(c0p), full((c0p, pack * e1))],
        out_specs=[row_spec(pack * e1), stat_spec(pack * e1), stat_spec(pack * e1)],
        out_shape=[jax.ShapeDtypeStruct((n_pad, pack * e1), jnp.float32),
                   stat_shape(pack * e1), stat_shape(pack * e1)],
        compiler_params=cp,
        cost_estimate=pl.CostEstimate(
            flops=2 * n_pad * c0p * pack * e1, transcendentals=0,
            bytes_accessed=4 * n_pad * (c0p + pack * e1)),
    )(xp, w1bd)
    sc1, sh1 = _stats_to_scale_shift(s1, q1, g1, b1, pack, e1, n)

    # pass 2: H1 = relu(BN(Y1)); Y2 = H1 @ blockdiag(W2^T), per-tile stats(Y2)
    y2, s2, q2 = pl.pallas_call(
        functools.partial(_norm_mm_stats_kernel, n_valid=n, pack=pack,
                          e_in=e1, tile_rows=tile, need_mask=need_mask),
        grid=grid,
        in_specs=[row_spec(pack * e1), full((1, pack * e1)), full((1, pack * e1)),
                  full((pack * e1, pack * e2))],
        out_specs=[row_spec(pack * e2), stat_spec(pack * e2), stat_spec(pack * e2)],
        out_shape=[jax.ShapeDtypeStruct((n_pad, pack * e2), jnp.float32),
                   stat_shape(pack * e2), stat_shape(pack * e2)],
        compiler_params=cp,
        cost_estimate=pl.CostEstimate(
            flops=2 * n_pad * pack * pack * e1 * e2, transcendentals=0,
            bytes_accessed=4 * n_pad * pack * (e1 + e2)),
    )(y1, sc1, sh1, w2bd)
    sc2, sh2 = _stats_to_scale_shift(s2, q2, g2, b2, pack, e2, n)

    # pass 3: H2 = relu(BN(Y2)); Y3 = H2 @ blockdiag(W3^T), per-tile stats(Y3)
    y3, s3, q3 = pl.pallas_call(
        functools.partial(_norm_mm_stats_kernel, n_valid=n, pack=pack,
                          e_in=e2, tile_rows=tile, need_mask=need_mask),
        grid=grid,
        in_specs=[row_spec(pack * e2), full((1, pack * e2)), full((1, pack * e2)),
                  full((pack * e2, pack * e3))],
        out_specs=[row_spec(pack * e3), stat_spec(pack * e3), stat_spec(pack * e3)],
        out_shape=[jax.ShapeDtypeStruct((n_pad, pack * e3), jnp.float32),
                   stat_shape(pack * e3), stat_shape(pack * e3)],
        compiler_params=cp,
        cost_estimate=pl.CostEstimate(
            flops=2 * n_pad * pack * pack * e2 * e3, transcendentals=0,
            bytes_accessed=4 * n_pad * pack * (e2 + e3)),
    )(y2, sc2, sh2, w3bd)
    sc3, sh3 = _stats_to_scale_shift(s3, q3, g3, b3, pack, e3, n)

    # pass 4: OUT = relu(BN(Y3)), aliased in place over Y3 (no extra HBM alloc)
    out_p = pl.pallas_call(
        _norm_relu_kernel,
        grid=grid,
        in_specs=[row_spec(pack * e3), full((1, pack * e3)), full((1, pack * e3))],
        out_specs=row_spec(pack * e3),
        out_shape=jax.ShapeDtypeStruct((n_pad, pack * e3), jnp.float32),
        compiler_params=cp,
        input_output_aliases={0: 0},
        cost_estimate=pl.CostEstimate(
            flops=3 * n_pad * pack * e3, transcendentals=0,
            bytes_accessed=8 * n_pad * pack * e3),
    )(y3, sc3, sh3)

    return out_p[:n_phys] if n_pad != n_phys else out_p


# ---------------------------------------------------------------------------
# Public wrapper
# ---------------------------------------------------------------------------
def gep_encoder_forward(x, params, channel_len, *, pack=4, tile_rows=1024,
                        force_mode=None):
    """Forward pass of GEPEncoder.  x: any shape flattening to (-1, channel_len)."""
    x2d = x.reshape(-1, channel_len).astype(jnp.float32)
    n = x2d.shape[0]

    (w1, _lb1, g1, be1), (w2, _lb2, g2, be2), (w3, _lb3, g3, be3) = params
    e1, e2, e3 = w1.shape[0], w2.shape[0], w3.shape[0]
    dims = (e1, e2, e3)

    # ---- lane-dense packing: `pack` logical rows per physical row ----------
    rem = (-n) % pack
    if rem:                              # only when n % pack != 0 (rare)
        x2d = jnp.pad(x2d, ((0, rem), (0, 0)))
    n_phys = (n + rem) // pack
    xp = x2d.reshape(n_phys, pack * channel_len)       # free: contiguous rows

    f32 = lambda a: jnp.asarray(a, jnp.float32)
    eye = jnp.eye(pack, dtype=jnp.float32)
    # Linear biases are cancelled exactly by train-mode BatchNorm -> dropped.
    wbds = (jnp.kron(eye, f32(w1).T),
            jnp.kron(eye, f32(w2).T),
            jnp.kron(eye, f32(w3).T))

    # ---- VMEM-capacity-aware dispatch (v5e/v6e: 128 MiB, v7x: 64 MiB) ------
    try:
        vmem_cap = int(getattr(pltpu.get_tpu_info(), "vmem_capacity_bytes",
                               64 * 1024 * 1024))
    except Exception:
        vmem_cap = 64 * 1024 * 1024
    vmem_limit = min(vmem_cap // 2, 64 * 1024 * 1024)
    per_phys_row_bytes = 4 * pack * (channel_len + 2 * (e1 + e2 + e3))
    fits_vmem = per_phys_row_bytes * n_phys <= vmem_cap // 4
    use_fused = (force_mode == "fused") or (force_mode is None and fits_vmem)

    if use_fused:
        bn = (f32(g1).reshape(1, e1), f32(be1).reshape(1, e1),
              f32(g2).reshape(1, e2), f32(be2).reshape(1, e2),
              f32(g3).reshape(1, e3), f32(be3).reshape(1, e3))
        out_p = _fused_forward(xp, wbds, bn, n, n_phys, pack, dims, vmem_limit)
    else:
        bn = (f32(g1), f32(be1), f32(g2), f32(be2), f32(g3), f32(be3))
        out_p = _tiled_forward(xp, wbds, bn, n, pack, dims, tile_rows, vmem_limit)

    out = out_p.reshape(n_phys * pack, e3)             # free unpack
    return out if rem == 0 else out[:n]


# ---------------------------------------------------------------------------
# Parameters / reference
# ---------------------------------------------------------------------------
def init_params(key, channel_len, e1, e2, e3):
    """Deterministic synthetic parameters (Linear W/b + BN gamma/beta).
    gamma/beta are non-trivial so the scale/shift path is actually exercised."""
    def layer_params(k, fan_in, fan_out):
        kw, kb, kg, kbeta = jax.random.split(k, 4)
        bound = 1.0 / jnp.sqrt(fan_in)
        w = jax.random.uniform(kw, (fan_out, fan_in), jnp.float32, -bound, bound)
        b = jax.random.uniform(kb, (fan_out,), jnp.float32, -bound, bound)
        gamma = jax.random.uniform(kg, (fan_out,), jnp.float32, 0.5, 1.5)
        beta = jax.random.uniform(kbeta, (fan_out,), jnp.float32, -0.5, 0.5)
        return (w, b, gamma, beta)

    k1, k2, k3 = jax.random.split(key, 3)
    return (layer_params(k1, channel_len, e1),
            layer_params(k2, e1, e2),
            layer_params(k3, e2, e3))


def _reference(x, params, channel_len):
    """Pure-JAX reference of the PyTorch forward (training-mode BatchNorm),
    INCLUDING the Linear bias (verifies dropping it in the kernel is exact)."""
    h = x.reshape(-1, channel_len).astype(jnp.float32)
    for (w, b, g, be) in params:
        y = h @ w.T + b
        mean = jnp.mean(y, axis=0, keepdims=True)
        var = jnp.mean((y - mean) ** 2, axis=0, keepdims=True)
        y = (y - mean) / jnp.sqrt(var + EPS) * g + be
        h = jnp.maximum(y, 0.0)
    return h


if __name__ == "__main__":
    channel_len, e1, e2, e3 = 16, 32, 64, 32
    key = jax.random.PRNGKey(0)
    kx, kx2, kp = jax.random.split(key, 3)

    params = init_params(kp, channel_len, e1, e2, e3)

    # (2, 5, 16, 16) -> 160 rows of 16 features.
    x = jax.random.normal(kx, (2, 5, 16, 16), jnp.float32)
    ref = _reference(x, params, channel_len)

    # 1) default dispatch -> fused, fully VMEM-resident single kernel.
    fwd_fused = jax.jit(lambda xx, pp: gep_encoder_forward(xx, pp, channel_len))
    out = jax.block_until_ready(fwd_fused(x, params))
    assert out.shape == (160, e3), out.shape
    err = float(jnp.max(jnp.abs(out - ref)))
    assert jnp.allclose(out, ref, atol=1e-3, rtol=1e-3), f"fused mismatch {err}"

    # 2) forced tiled/streaming fallback with a small tile so the grid has
    #    several blocks plus padded tail rows (exercises masking and the
    #    per-tile partial-stat reduction).
    fwd_tiled = jax.jit(lambda xx, pp: gep_encoder_forward(
        xx, pp, channel_len, tile_rows=16, force_mode="tiled"))
    out_t = jax.block_until_ready(fwd_tiled(x, params))
    err_t = float(jnp.max(jnp.abs(out_t - ref)))
    assert jnp.allclose(out_t, ref, atol=1e-3, rtol=1e-3), f"tiled mismatch {err_t}"

    # 3) batch not divisible by the packing factor (21 rows) -> fused path with
    #    padded logical rows and the variance pad-correction.
    x_odd = jax.random.normal(kx2, (3, 7, channel_len), jnp.float32)
    ref_odd = _reference(x_odd, params, channel_len)
    out_odd = jax.block_until_ready(fwd_fused(x_odd, params))
    assert out_odd.shape == (21, e3), out_odd.shape
    err_o = float(jnp.max(jnp.abs(out_odd - ref_odd)))
    assert jnp.allclose(out_odd, ref_odd, atol=1e-3, rtol=1e-3), f"odd mismatch {err_o}"

    print("KERNEL_OK")
</pallas_src>

<mosaic_0001>
module attributes {stable_mosaic.version = 11 : i64} {
  func.func @_fused_kernel(%arg0: i32, %arg1: memref<40x64xf32, #tpu.memory_space<vmem>>, %arg2: memref<64x128xf32, #tpu.memory_space<vmem>>, %arg3: memref<128x256xf32, #tpu.memory_space<vmem>>, %arg4: memref<256x128xf32, #tpu.memory_space<vmem>>, %arg5: memref<1x32xf32, #tpu.memory_space<vmem>>, %arg6: memref<1x32xf32, #tpu.memory_space<vmem>>, %arg7: memref<1x64xf32, #tpu.memory_space<vmem>>, %arg8: memref<1x64xf32, #tpu.memory_space<vmem>>, %arg9: memref<1x32xf32, #tpu.memory_space<vmem>>, %arg10: memref<1x32xf32, #tpu.memory_space<vmem>>, %arg11: memref<40x128xf32, #tpu.memory_space<vmem>>) attributes {dimension_semantics = [#tpu.dimension_semantics<arbitrary>], iteration_bounds = array<i64: 1>, scalar_prefetch = 0 : i64, scratch_operands = 0 : i64, tpu.core_type = #tpu.core_type<tc>, window_params = [{pipeline_mode = #tpu.pipeline_mode<synchronous>, transform_indices = @transform_0, window_bounds = array<i64: 40, 64>}, {pipeline_mode = #tpu.pipeline_mode<synchronous>, transform_indices = @transform_1, window_bounds = array<i64: 64, 128>}, {pipeline_mode = #tpu.pipeline_mode<synchronous>, transform_indices = @transform_2, window_bounds = array<i64: 128, 256>}, {pipeline_mode = #tpu.pipeline_mode<synchronous>, transform_indices = @transform_3, window_bounds = array<i64: 256, 128>}, {pipeline_mode = #tpu.pipeline_mode<synchronous>, transform_indices = @transform_4, window_bounds = array<i64: 1, 32>}, {pipeline_mode = #tpu.pipeline_mode<synchronous>, transform_indices = @transform_5, window_bounds = array<i64: 1, 32>}, {pipeline_mode = #tpu.pipeline_mode<synchronous>, transform_indices = @transform_6, window_bounds = array<i64: 1, 64>}, {pipeline_mode = #tpu.pipeline_mode<synchronous>, transform_indices = @transform_7, window_bounds = array<i64: 1, 64>}, {pipeline_mode = #tpu.pipeline_mode<synchronous>, transform_indices = @transform_8, window_bounds = array<i64: 1, 32>}, {pipeline_mode = #tpu.pipeline_mode<synchronous>, transform_indices = @transform_9, window_bounds = array<i64: 1, 32>}, {pipeline_mode = #tpu.pipeline_mode<synchronous>, transform_indices = @transform_10, window_bounds = array<i64: 40, 128>}]} {
    %c0 = arith.constant 0 : index
    %c0_0 = arith.constant 0 : index
    %0 = vector.load %arg1[%c0, %c0_0] : memref<40x64xf32, #tpu.memory_space<vmem>>, vector<40x64xf32>
    %c0_1 = arith.constant 0 : index
    %c0_2 = arith.constant 0 : index
    %1 = vector.load %arg2[%c0_1, %c0_2] : memref<64x128xf32, #tpu.memory_space<vmem>>, vector<64x128xf32>
    %cst = arith.constant dense<0.000000e+00> : vector<40x128xf32>
    %2 = tpu.matmul %0, %1, %cst {dimension_numbers = #tpu.dot_dimension_numbers<[1], [0], [0], [1], [0, 0, 1, 1], [], []>} : vector<40x64xf32>, vector<64x128xf32>, vector<40x128xf32> -> vector<40x128xf32>
    %cst_3 = arith.constant dense<0.000000e+00> : vector<128xf32>
    %3 = vector.multi_reduction <add>, %2, %cst_3 [0] : vector<40x128xf32> to vector<128xf32>
    %4 = vector.shape_cast %3 : vector<128xf32> to vector<1x128xf32>
    %5 = vector.extract_strided_slice %4 {offsets = [0, 0], sizes = [1, 32], strides = [1, 1]} : vector<1x128xf32> to vector<1x32xf32>
    %6 = vector.extract_strided_slice %4 {offsets = [0, 32], sizes = [1, 32], strides = [1, 1]} : vector<1x128xf32> to vector<1x32xf32>
    %7 = arith.addf %5, %6 : vector<1x32xf32>
    %8 = vector.extract_strided_slice %4 {offsets = [0, 64], sizes = [1, 32], strides = [1, 1]} : vector<1x128xf32> to vector<1x32xf32>
    %9 = arith.addf %7, %8 : vector<1x32xf32>
    %10 = vector.extract_strided_slice %4 {offsets = [0, 96], sizes = [1, 32], strides = [1, 1]} : vector<1x128xf32> to vector<1x32xf32>
    %11 = arith.addf %9, %10 : vector<1x32xf32>
    %cst_4 = arith.constant 6.250000e-03 : f32
    %12 = vector.broadcast %cst_4 : f32 to vector<1x32xf32>
    %13 = arith.mulf %11, %12 : vector<1x32xf32>
    %14 = tpu.concatenate %13, %13, %13, %13 in 1 : vector<1x32xf32>, vector<1x32xf32>, vector<1x32xf32>, vector<1x32xf32> -> vector<1x128xf32>
    %15 = vector.broadcast %14 : vector<1x128xf32> to vector<40x128xf32>
    %16 = arith.subf %2, %15 : vector<40x128xf32>
    %17 = arith.mulf %16, %16 : vector<40x128xf32>
    %cst_5 = arith.constant dense<0.000000e+00> : vector<128xf32>
    %18 = vector.multi_reduction <add>, %17, %cst_5 [0] : vector<40x128xf32> to vector<128xf32>
    %19 = vector.shape_cast %18 : vector<128xf32> to vector<1x128xf32>
    %20 = vector.extract_strided_slice %19 {offsets = [0, 0], sizes = [1, 32], strides = [1, 1]} : vector<1x128xf32> to vector<1x32xf32>
    %21 = vector.extract_strided_slice %19 {offsets = [0, 32], sizes = [1, 32], strides = [1, 1]} : vector<1x128xf32> to vector<1x32xf32>
    %22 = arith.addf %20, %21 : vector<1x32xf32>
    %23 = vector.extract_strided_slice %19 {offsets = [0, 64], sizes = [1, 32], strides = [1, 1]} : vector<1x128xf32> to vector<1x32xf32>
    %24 = arith.addf %22, %23 : vector<1x32xf32>
    %25 = vector.extract_strided_slice %19 {offsets = [0, 96], sizes = [1, 32], strides = [1, 1]} : vector<1x128xf32> to vector<1x32xf32>
    %26 = arith.addf %24, %25 : vector<1x32xf32>
    %cst_6 = arith.constant 6.250000e-03 : f32
    %27 = vector.broadcast %cst_6 : f32 to vector<1x32xf32>
    %28 = arith.mulf %26, %27 : vector<1x32xf32>
    %cst_7 = arith.constant 0.000000e+00 : f32
    %29 = vector.broadcast %cst_7 : f32 to vector<1x32xf32>
    %30 = arith.maximumf %28, %29 : vector<1x32xf32>
    %c0_8 = arith.constant 0 : index
    %c0_9 = arith.constant 0 : index
    %31 = vector.load %arg5[%c0_8, %c0_9] : memref<1x32xf32, #tpu.memory_space<vmem>>, vector<1x32xf32>
    %cst_10 = arith.constant 9.99999974E-6 : f32
    %32 = vector.broadcast %cst_10 : f32 to vector<1x32xf32>
    %33 = arith.addf %30, %32 : vector<1x32xf32>
    %34 = math.rsqrt %33 : vector<1x32xf32>
    %35 = arith.mulf %31, %34 : vector<1x32xf32>
    %c0_11 = arith.constant 0 : index
    %c0_12 = arith.constant 0 : index
    %36 = vector.load %arg6[%c0_11, %c0_12] : memref<1x32xf32, #tpu.memory_space<vmem>>, vector<1x32xf32>
    %37 = arith.mulf %13, %35 : vector<1x32xf32>
    %38 = arith.subf %36, %37 : vector<1x32xf32>
    %39 = tpu.concatenate %35, %35, %35, %35 in 1 : vector<1x32xf32>, vector<1x32xf32>, vector<1x32xf32>, vector<1x32xf32> -> vector<1x128xf32>
    %40 = vector.broadcast %39 : vector<1x128xf32> to vector<40x128xf32>
    %41 = arith.mulf %2, %40 : vector<40x128xf32>
    %42 = tpu.concatenate %38, %38, %38, %38 in 1 : vector<1x32xf32>, vector<1x32xf32>, vector<1x32xf32>, vector<1x32xf32> -> vector<1x128xf32>
    %43 = vector.broadcast %42 : vector<1x128xf32> to vector<40x128xf32>
    %44 = arith.addf %41, %43 : vector<40x128xf32>
    %cst_13 = arith.constant 0.000000e+00 : f32
    %45 = vector.broadcast %cst_13 : f32 to vector<40x128xf32>
    %46 = arith.maximumf %44, %45 : vector<40x128xf32>
    %c0_14 = arith.constant 0 : index
    %c0_15 = arith.constant 0 : index
    %47 = vector.load %arg3[%c0_14, %c0_15] : memref<128x256xf32, #tpu.memory_space<vmem>>, vector<128x256xf32>
    %cst_16 = arith.constant dense<0.000000e+00> : vector<40x256xf32>
    %48 = tpu.matmul %46, %47, %cst_16 {dimension_numbers = #tpu.dot_dimension_numbers<[1], [0], [0], [1], [0, 0, 1, 1], [], []>} : vector<40x128xf32>, vector<128x256xf32>, vector<40x256xf32> -> vector<40x256xf32>
    %cst_17 = arith.constant dense<0.000000e+00> : vector<256xf32>
    %49 = vector.multi_reduction <add>, %48, %cst_17 [0] : vector<40x256xf32> to vector<256xf32>
    %50 = vector.shape_cast %49 : vector<256xf32> to vector<1x256xf32>
    %51 = vector.extract_strided_slice %50 {offsets = [0, 0], sizes = [1, 64], strides = [1, 1]} : vector<1x256xf32> to vector<1x64xf32>
    %52 = vector.extract_strided_slice %50 {offsets = [0, 64], sizes = [1, 64], strides = [1, 1]} : vector<1x256xf32> to vector<1x64xf32>
    %53 = arith.addf %51, %52 : vector<1x64xf32>
    %54 = vector.extract_strided_slice %50 {offsets = [0, 128], sizes = [1, 64], strides = [1, 1]} : vector<1x256xf32> to vector<1x64xf32>
    %55 = arith.addf %53, %54 : vector<1x64xf32>
    %56 = vector.extract_strided_slice %50 {offsets = [0, 192], sizes = [1, 64], strides = [1, 1]} : vector<1x256xf32> to vector<1x64xf32>
    %57 = arith.addf %55, %56 : vector<1x64xf32>
    %cst_18 = arith.constant 6.250000e-03 : f32
    %58 = vector.broadcast %cst_18 : f32 to vector<1x64xf32>
    %59 = arith.mulf %57, %58 : vector<1x64xf32>
    %60 = tpu.concatenate %59, %59, %59, %59 in 1 : vector<1x64xf32>, vector<1x64xf32>, vector<1x64xf32>, vector<1x64xf32> -> vector<1x256xf32>
    %61 = vector.broadcast %60 : vector<1x256xf32> to vector<40x256xf32>
    %62 = arith.subf %48, %61 : vector<40x256xf32>
    %63 = arith.mulf %62, %62 : vector<40x256xf32>
    %cst_19 = arith.constant dense<0.000000e+00> : vector<256xf32>
    %64 = vector.multi_reduction <add>, %63, %cst_19 [0] : vector<40x256xf32> to vector<256xf32>
    %65 = vector.shape_cast %64 : vector<256xf32> to vector<1x256xf32>
    %66 = vector.extract_strided_slice %65 {offsets = [0, 0], sizes = [1, 64], strides = [1, 1]} : vector<1x256xf32> to vector<1x64xf32>
    %67 = vector.extract_strided_slice %65 {offsets = [0, 64], sizes = [1, 64], strides = [1, 1]} : vector<1x256xf32> to vector<1x64xf32>
    %68 = arith.addf %66, %67 : vector<1x64xf32>
    %69 = vector.extract_strided_slice %65 {offsets = [0, 128], sizes = [1, 64], strides = [1, 1]} : vector<1x256xf32> to vector<1x64xf32>
    %70 = arith.addf %68, %69 : vector<1x64xf32>
    %71 = vector.extract_strided_slice %65 {offsets = [0, 192], sizes = [1, 64], strides = [1, 1]} : vector<1x256xf32> to vector<1x64xf32>
    %72 = arith.addf %70, %71 : vector<1x64xf32>
    %cst_20 = arith.constant 6.250000e-03 : f32
    %73 = vector.broadcast %cst_20 : f32 to vector<1x64xf32>
    %74 = arith.mulf %72, %73 : vector<1x64xf32>
    %cst_21 = arith.constant 0.000000e+00 : f32
    %75 = vector.broadcast %cst_21 : f32 to vector<1x64xf32>
    %76 = arith.maximumf %74, %75 : vector<1x64xf32>
    %c0_22 = arith.constant 0 : index
    %c0_23 = arith.constant 0 : index
    %77 = vector.load %arg7[%c0_22, %c0_23] : memref<1x64xf32, #tpu.memory_space<vmem>>, vector<1x64xf32>
    %cst_24 = arith.constant 9.99999974E-6 : f32
    %78 = vector.broadcast %cst_24 : f32 to vector<1x64xf32>
    %79 = arith.addf %76, %78 : vector<1x64xf32>
    %80 = math.rsqrt %79 : vector<1x64xf32>
    %81 = arith.mulf %77, %80 : vector<1x64xf32>
    %c0_25 = arith.constant 0 : index
    %c0_26 = arith.constant 0 : index
    %82 = vector.load %arg8[%c0_25, %c0_26] : memref<1x64xf32, #tpu.memory_space<vmem>>, vector<1x64xf32>
    %83 = arith.mulf %59, %81 : vector<1x64xf32>
    %84 = arith.subf %82, %83 : vector<1x64xf32>
    %85 = tpu.concatenate %81, %81, %81, %81 in 1 : vector<1x64xf32>, vector<1x64xf32>, vector<1x64xf32>, vector<1x64xf32> -> vector<1x256xf32>
    %86 = vector.broadcast %85 : vector<1x256xf32> to vector<40x256xf32>
    %87 = arith.mulf %48, %86 : vector<40x256xf32>
    %88 = tpu.concatenate %84, %84, %84, %84 in 1 : vector<1x64xf32>, vector<1x64xf32>, vector<1x64xf32>, vector<1x64xf32> -> vector<1x256xf32>
    %89 = vector.broadcast %88 : vector<1x256xf32> to vector<40x256xf32>
    %90 = arith.addf %87, %89 : vector<40x256xf32>
    %cst_27 = arith.constant 0.000000e+00 : f32
    %91 = vector.broadcast %cst_27 : f32 to vector<40x256xf32>
    %92 = arith.maximumf %90, %91 : vector<40x256xf32>
    %c0_28 = arith.constant 0 : index
    %c0_29 = arith.constant 0 : index
    %93 = vector.load %arg4[%c0_28, %c0_29] : memref<256x128xf32, #tpu.memory_space<vmem>>, vector<256x128xf32>
    %cst_30 = arith.constant dense<0.000000e+00> : vector<40x128xf32>
    %94 = tpu.matmul %92, %93, %cst_30 {dimension_numbers = #tpu.dot_dimension_numbers<[1], [0], [0], [1], [0, 0, 1, 1], [], []>} : vector<40x256xf32>, vector<256x128xf32>, vector<40x128xf32> -> vector<40x128xf32>
    %cst_31 = arith.constant dense<0.000000e+00> : vector<128xf32>
    %95 = vector.multi_reduction <add>, %94, %cst_31 [0] : vector<40x128xf32> to vector<128xf32>
    %96 = vector.shape_cast %95 : vector<128xf32> to vector<1x128xf32>
    %97 = vector.extract_strided_slice %96 {offsets = [0, 0], sizes = [1, 32], strides = [1, 1]} : vector<1x128xf32> to vector<1x32xf32>
    %98 = vector.extract_strided_slice %96 {offsets = [0, 32], sizes = [1, 32], strides = [1, 1]} : vector<1x128xf32> to vector<1x32xf32>
    %99 = arith.addf %97, %98 : vector<1x32xf32>
    %100 = vector.extract_strided_slice %96 {offsets = [0, 64], sizes = [1, 32], strides = [1, 1]} : vector<1x128xf32> to vector<1x32xf32>
    %101 = arith.addf %99, %100 : vector<1x32xf32>
    %102 = vector.extract_strided_slice %96 {offsets = [0, 96], sizes = [1, 32], strides = [1, 1]} : vector<1x128xf32> to vector<1x32xf32>
    %103 = arith.addf %101, %102 : vector<1x32xf32>
    %cst_32 = arith.constant 6.250000e-03 : f32
    %104 = vector.broadcast %cst_32 : f32 to vector<1x32xf32>
    %105 = arith.mulf %103, %104 : vector<1x32xf32>
    %106 = tpu.concatenate %105, %105, %105, %105 in 1 : vector<1x32xf32>, vector<1x32xf32>, vector<1x32xf32>, vector<1x32xf32> -> vector<1x128xf32>
    %107 = vector.broadcast %106 : vector<1x128xf32> to vector<40x128xf32>
    %108 = arith.subf %94, %107 : vector<40x128xf32>
    %109 = arith.mulf %108, %108 : vector<40x128xf32>
    %cst_33 = arith.constant dense<0.000000e+00> : vector<128xf32>
    %110 = vector.multi_reduction <add>, %109, %cst_33 [0] : vector<40x128xf32> to vector<128xf32>
    %111 = vector.shape_cast %110 : vector<128xf32> to vector<1x128xf32>
    %112 = vector.extract_strided_slice %111 {offsets = [0, 0], sizes = [1, 32], strides = [1, 1]} : vector<1x128xf32> to vector<1x32xf32>
    %113 = vector.extract_strided_slice %111 {offsets = [0, 32], sizes = [1, 32], strides = [1, 1]} : vector<1x128xf32> to vector<1x32xf32>
    %114 = arith.addf %112, %113 : vector<1x32xf32>
    %115 = vector.extract_strided_slice %111 {offsets = [0, 64], sizes = [1, 32], strides = [1, 1]} : vector<1x128xf32> to vector<1x32xf32>
    %116 = arith.addf %114, %115 : vector<1x32xf32>
    %117 = vector.extract_strided_slice %111 {offsets = [0, 96], sizes = [1, 32], strides = [1, 1]} : vector<1x128xf32> to vector<1x32xf32>
    %118 = arith.addf %116, %117 : vector<1x32xf32>
    %cst_34 = arith.constant 6.250000e-03 : f32
    %119 = vector.broadcast %cst_34 : f32 to vector<1x32xf32>
    %120 = arith.mulf %118, %119 : vector<1x32xf32>
    %cst_35 = arith.constant 0.000000e+00 : f32
    %121 = vector.broadcast %cst_35 : f32 to vector<1x32xf32>
    %122 = arith.maximumf %120, %121 : vector<1x32xf32>
    %c0_36 = arith.constant 0 : index
    %c0_37 = arith.constant 0 : index
    %123 = vector.load %arg9[%c0_36, %c0_37] : memref<1x32xf32, #tpu.memory_space<vmem>>, vector<1x32xf32>
    %cst_38 = arith.constant 9.99999974E-6 : f32
    %124 = vector.broadcast %cst_38 : f32 to vector<1x32xf32>
    %125 = arith.addf %122, %124 : vector<1x32xf32>
    %126 = math.rsqrt %125 : vector<1x32xf32>
    %127 = arith.mulf %123, %126 : vector<1x32xf32>
    %c0_39 = arith.constant 0 : index
    %c0_40 = arith.constant 0 : index
    %128 = vector.load %arg10[%c0_39, %c0_40] : memref<1x32xf32, #tpu.memory_space<vmem>>, vector<1x32xf32>
    %129 = arith.mulf %105, %127 : vector<1x32xf32>
    %130 = arith.subf %128, %129 : vector<1x32xf32>
    %131 = tpu.concatenate %127, %127, %127, %127 in 1 : vector<1x32xf32>, vector<1x32xf32>, vector<1x32xf32>, vector<1x32xf32> -> vector<1x128xf32>
    %132 = vector.broadcast %131 : vector<1x128xf32> to vector<40x128xf32>
    %133 = arith.mulf %94, %132 : vector<40x128xf32>
    %134 = tpu.concatenate %130, %130, %130, %130 in 1 : vector<1x32xf32>, vector<1x32xf32>, vector<1x32xf32>, vector<1x32xf32> -> vector<1x128xf32>
    %135 = vector.broadcast %134 : vector<1x128xf32> to vector<40x128xf32>
    %136 = arith.addf %133, %135 : vector<40x128xf32>
    %cst_41 = arith.constant 0.000000e+00 : f32
    %137 = vector.broadcast %cst_41 : f32 to vector<40x128xf32>
    %138 = arith.maximumf %136, %137 : vector<40x128xf32>
    %c0_42 = arith.constant 0 : index
    %c0_43 = arith.constant 0 : index
    %139 = vector.load %arg11[%c0_42, %c0_43] : memref<40x128xf32, #tpu.memory_space<vmem>>, vector<40x128xf32>
    tpu.vector_store %arg11[%c0_42, %c0_43], %138 {strides = array<i32>} : memref<40x128xf32, #tpu.memory_space<vmem>>, vector<40x128xf32>,
    return
  }
  func.func @transform_0(%arg0: i32) -> (i32, i32) {
    %c0_i32 = arith.constant 0 : i32
    %c0_i32_0 = arith.constant 0 : i32
    %c0_i32_1 = arith.constant 0 : i32
    return %c0_i32, %c0_i32_0 : i32, i32
  }
  func.func @transform_1(%arg0: i32) -> (i32, i32) {
    %c0_i32 = arith.constant 0 : i32
    %c0_i32_0 = arith.constant 0 : i32
    %c0_i32_1 = arith.constant 0 : i32
    return %c0_i32, %c0_i32_0 : i32, i32
  }
  func.func @transform_2(%arg0: i32) -> (i32, i32) {
    %c0_i32 = arith.constant 0 : i32
    %c0_i32_0 = arith.constant 0 : i32
    %c0_i32_1 = arith.constant 0 : i32
    return %c0_i32, %c0_i32_0 : i32, i32
  }
  func.func @transform_3(%arg0: i32) -> (i32, i32) {
    %c0_i32 = arith.constant 0 : i32
    %c0_i32_0 = arith.constant 0 : i32
    %c0_i32_1 = arith.constant 0 : i32
    return %c0_i32, %c0_i32_0 : i32, i32
  }
  func.func @transform_4(%arg0: i32) -> (i32, i32) {
    %c0_i32 = arith.constant 0 : i32
    %c0_i32_0 = arith.constant 0 : i32
    %c0_i32_1 = arith.constant 0 : i32
    return %c0_i32, %c0_i32_0 : i32, i32
  }
  func.func @transform_5(%arg0: i32) -> (i32, i32) {
    %c0_i32 = arith.constant 0 : i32
    %c0_i32_0 = arith.constant 0 : i32
    %c0_i32_1 = arith.constant 0 : i32
    return %c0_i32, %c0_i32_0 : i32, i32
  }
  func.func @transform_6(%arg0: i32) -> (i32, i32) {
    %c0_i32 = arith.constant 0 : i32
    %c0_i32_0 = arith.constant 0 : i32
    %c0_i32_1 = arith.constant 0 : i32
    return %c0_i32, %c0_i32_0 : i32, i32
  }
  func.func @transform_7(%arg0: i32) -> (i32, i32) {
    %c0_i32 = arith.constant 0 : i32
    %c0_i32_0 = arith.constant 0 : i32
    %c0_i32_1 = arith.constant 0 : i32
    return %c0_i32, %c0_i32_0 : i32, i32
  }
  func.func @transform_8(%arg0: i32) -> (i32, i32) {
    %c0_i32 = arith.constant 0 : i32
    %c0_i32_0 = arith.constant 0 : i32
    %c0_i32_1 = arith.constant 0 : i32
    return %c0_i32, %c0_i32_0 : i32, i32
  }
  func.func @transform_9(%arg0: i32) -> (i32, i32) {
    %c0_i32 = arith.constant 0 : i32
    %c0_i32_0 = arith.constant 0 : i32
    %c0_i32_1 = arith.constant 0 : i32
    return %c0_i32, %c0_i32_0 : i32, i32
  }
  func.func @transform_10(%arg0: i32) -> (i32, i32) {
    %c0_i32 = arith.constant 0 : i32
    %c0_i32_0 = arith.constant 0 : i32
    %c0_i32_1 = arith.constant 0 : i32
    return %c0_i32, %c0_i32_0 : i32, i32
  }
}

</mosaic_0001>

<llo_original>
// kernel: _lambda_.1
$region0: #{_lambda_.1}
  #allocation0 [shape = 'u32[]', space=smem, size = 0x4, offset = 0x4, fixed_abs, tag = 'smem constant byte address 0x4 - core index']
  #allocation1 [shape = 'u32[144,128]{1,0:T(1,128)}', space=vmem, size = 0x12000, scoped, tag = 'internal scratch']
  %s0 = inlined_call_operand.vmem [shape: f32[40,64], index: 0, kind: input, shape index: {}]
  %s1 = inlined_call_operand.vmem [shape: f32[64,128], index: 1, kind: input, shape index: {}]
  %s2 = inlined_call_operand.vmem [shape: f32[128,256], index: 2, kind: input, shape index: {}]
  %s3 = inlined_call_operand.vmem [shape: f32[256,128], index: 3, kind: input, shape index: {}]
  %s4 = inlined_call_operand.vmem [shape: f32[1,32], index: 4, kind: input, shape index: {}]
  %s5 = inlined_call_operand.vmem [shape: f32[1,32], index: 5, kind: input, shape index: {}]
  %s6 = inlined_call_operand.vmem [shape: f32[1,64], index: 6, kind: input, shape index: {}]
  %s7 = inlined_call_operand.vmem [shape: f32[1,64], index: 7, kind: input, shape index: {}]
  %s8 = inlined_call_operand.vmem [shape: f32[1,32], index: 8, kind: input, shape index: {}]
  %s9 = inlined_call_operand.vmem [shape: f32[1,32], index: 9, kind: input, shape index: {}]
  %s10 = inlined_call_operand.vmem [shape: f32[40,128], index: 10, kind: output, shape index: {}]
  %s11 = sld [smem:[#allocation0]]
  $region50: #{_lambda_.1} parent=0
    _
  %s13 = ssub.s32 1, %s11
  %s14 = scalar_select 0, %s13, %s11
  // Predicated region
  $region2: #{_lambda_.1} parent=0 // pred_check
    _
  $region3: #{_lambda_.1} parent=0 // pred_check_branch
    %16 = sbr.rel (0) target = $region5
  $region4: #{_lambda_.1} parent=0 // pred_region
    _
  $region5: #{_lambda_.1} parent=0 // pred_fallthru
    _
  // Predicated region
  $region6: #{_lambda_.1} parent=0 // pred_check
    _
  $region7: #{_lambda_.1} parent=0 // pred_check_branch
    %18 = sbr.rel (0) target = $region9
  $region8: #{_lambda_.1} parent=0 // pred_region
    _
  $region9: #{_lambda_.1} parent=0 // pred_fallthru
    _
  // Predicated region
  $region10: #{_lambda_.1} parent=0 // pred_check
    _
  $region11: #{_lambda_.1} parent=0 // pred_check_branch
    %20 = sbr.rel (0) target = $region13
  $region12: #{_lambda_.1} parent=0 // pred_region
    _
  $region13: #{_lambda_.1} parent=0 // pred_fallthru
    _
  // Predicated region
  $region14: #{_lambda_.1} parent=0 // pred_check
    _
  $region15: #{_lambda_.1} parent=0 // pred_check_branch
    %22 = sbr.rel (0) target = $region17
  $region16: #{_lambda_.1} parent=0 // pred_region
    _
  $region17: #{_lambda_.1} parent=0 // pred_fallthru
    _
  // Predicated region
  $region18: #{_lambda_.1} parent=0 // pred_check
    _
  $region19: #{_lambda_.1} parent=0 // pred_check_branch
    %24 = sbr.rel (0) target = $region21
  $region20: #{_lambda_.1} parent=0 // pred_region
    _
  $region21: #{_lambda_.1} parent=0 // pred_fallthru
    _
  // Predicated region
  $region22: #{_lambda_.1} parent=0 // pred_check
    _
  $region23: #{_lambda_.1} parent=0 // pred_check_branch
    %26 = sbr.rel (0) target = $region25
  $region24: #{_lambda_.1} parent=0 // pred_region
    _
  $region25: #{_lambda_.1} parent=0 // pred_fallthru
    _
  // Predicated region
  $region26: #{_lambda_.1} parent=0 // pred_check
    _
  $region27: #{_lambda_.1} parent=0 // pred_check_branch
    %28 = sbr.rel (0) target = $region29
  $region28: #{_lambda_.1} parent=0 // pred_region
    _
  $region29: #{_lambda_.1} parent=0 // pred_fallthru
    _
  // Predicated region
  $region30: #{_lambda_.1} parent=0 // pred_check
    _
  $region31: #{_lambda_.1} parent=0 // pred_check_branch
    %30 = sbr.rel (0) target = $region33
  $region32: #{_lambda_.1} parent=0 // pred_region
    _
  $region33: #{_lambda_.1} parent=0 // pred_fallthru
    _
  // Predicated region
  $region34: #{_lambda_.1} parent=0 // pred_check
    _
  $region35: #{_lambda_.1} parent=0 // pred_check_branch
    %32 = sbr.rel (0) target = $region37
  $region36: #{_lambda_.1} parent=0 // pred_region
    _
  $region37: #{_lambda_.1} parent=0 // pred_fallthru
    _
  // Predicated region
  $region38: #{_lambda_.1} parent=0 // pred_check
    _
  $region39: #{_lambda_.1} parent=0 // pred_check_branch
    %34 = sbr.rel (0) target = $region41
  $region40: #{_lambda_.1} parent=0 // pred_region
    _
  $region41: #{_lambda_.1} parent=0 // pred_fallthru
    _
  %v35 = vld [vmem:[%s0] sm:$0xff]
  %v36 = vld [vmem:[%s0 + $0x8] sm:$0xff]
  %v37 = vld [vmem:[%s0 + $0x10] sm:$0xff]
  %v38 = vld [vmem:[%s0 + $0x18] sm:$0xff]
  %v39 = vld [vmem:[%s0 + $0x20] sm:$0xff]
  %v40 = vld [vmem:[%s1] sm:$0xff]
  %v41 = vld [vmem:[%s1 + $0x8] sm:$0xff]
  %v42 = vld [vmem:[%s1 + $0x10] sm:$0xff]
  %v43 = vld [vmem:[%s1 + $0x18] sm:$0xff]
  %v44 = vld [vmem:[%s1 + $0x20] sm:$0xff]
  %v45 = vld [vmem:[%s1 + $0x28] sm:$0xff]
  %v46 = vld [vmem:[%s1 + $0x30] sm:$0xff]
  %v47 = vld [vmem:[%s1 + $0x38] sm:$0xff]
  %vm48 = vcmask 523264
  %v50 = vsel %vm48, %v35, 0
  %v53 = vsel %vm48, %v36, 0
  %v56 = vsel %vm48, %v37, 0
  %v59 = vsel %vm48, %v38, 0
  %v62 = vsel %vm48, %v39, 0
  %64 = vmatprep.subr.mxu0 0.0
  %65 = vmatpush1.msra.mxu0 0.0
  %66 = vmatprep.subr.mxu0 0.0
  %67 = vmatpush1.msra.mxu0 0.0
  %68 = vmatprep.subr.mxu0 0.0
  %69 = vmatpush1.msra.mxu0 0.0
  %70 = vmatprep.subr.mxu0 0.0
  %71 = vmatpush1.msra.mxu0 0.0
  %72 = vmatprep.subr.mxu0 0.0
  %73 = vmatpush1.msra.mxu0 0.0
  %74 = vmatprep.subr.mxu0 0.0
  %75 = vmatpush1.msra.mxu0 0.0
  %76 = vmatprep.subr.mxu0 0.0
  %77 = vmatpush1.msra.mxu0 0.0
  %78 = vmatprep.subr.mxu0 0.0
  %79 = vmatpush1.msra.mxu0 0.0
  %80 = vmatprep.subr.mxu0 0.0
  %81 = vmatpush1.msra.mxu0 %v47
  %82 = vmatprep.subr.mxu0 0.0
  %83 = vmatpush1.msra.mxu0 %v46
  %84 = vmatprep.subr.mxu0 0.0
  %85 = vmatpush1.msra.mxu0 %v45
  %86 = vmatprep.subr.mxu0 0.0
  %87 = vmatpush1.msra.mxu0 %v44
  %88 = vmatprep.subr.mxu0 0.0
  %89 = vmatpush1.msra.mxu0 %v43
  %90 = vmatprep.subr.mxu0 0.0
  %91 = vmatpush1.msra.mxu0 %v42
  %92 = vmatprep.subr.mxu0 0.0
  %93 = vmatpush1.msra.mxu0 %v41
  %94 = vmatprep.subr.mxu0 0.0
  %95 = vmatpush1.msra.mxu0 %v40
  %96 = vmatprep.subr.mxu0 0.0
  %97 = vmatpush2.msra.mxu0 0.0
  %98 = vmatprep.subr.mxu0 0.0
  %99 = vmatpush2.msra.mxu0 0.0
  %100 = vmatprep.subr.mxu0 0.0
  %101 = vmatpush2.msra.mxu0 0.0
  %102 = vmatprep.subr.mxu0 0.0
  %103 = vmatpush2.msra.mxu0 0.0
  %104 = vmatprep.subr.mxu0 0.0
  %105 = vmatpush2.msra.mxu0 0.0
  %106 = vmatprep.subr.mxu0 0.0
  %107 = vmatpush2.msra.mxu0 0.0
  %108 = vmatprep.subr.mxu0 0.0
  %109 = vmatpush2.msra.mxu0 0.0
  %110 = vmatprep.subr.mxu0 0.0
  %111 = vmatpush2.msra.mxu0 0.0
  %112 = vmatprep.subr.mxu0 0.0
  %113 = vmatpush2.msra.mxu0 0.0
  %114 = vmatprep.subr.mxu0 0.0
  %115 = vmatpush2.msra.mxu0 0.0
  %116 = vmatprep.subr.mxu0 0.0
  %117 = vmatpush2.msra.mxu0 0.0
  %118 = vmatprep.subr.mxu0 0.0
  %119 = vmatpush2.msra.mxu0 0.0
  %120 = vmatprep.subr.mxu0 0.0
  %121 = vmatpush2.msra.mxu0 0.0
  %122 = vmatprep.subr.mxu0 0.0
  %123 = vmatpush2.msra.mxu0 0.0
  %124 = vmatprep.subr.mxu0 0.0
  %125 = vmatpush2.msra.mxu0 0.0
  %126 = vmatprep.subr.mxu0 0.0
  %127 = vmatpush2.msra.mxu0 0.0
  %128 = vmatprep.mubr.f32.mxu0 0.0
  %129 = vmatmul.mubr.f32.gmra.mxu0 %v50
  %v130 = vpop.f32.mrf.mxu0
  %v131 = vadd.f32 0.0, %v130
  %v132 = vpop.f32.mrf.mxu0
  %133 = vmatprep.mubr.f32.mxu0 0.0
  %134 = vmatmul.mubr.f32.gmra.mxu0 %v53
  %v135 = vpop.f32.mrf.mxu0
  %v136 = vadd.f32 0.0, %v135
  %v137 = vpop.f32.mrf.mxu0
  %138 = vmatprep.mubr.f32.mxu0 0.0
  %139 = vmatmul.mubr.f32.gmra.mxu0 %v56
  %v140 = vpop.f32.mrf.mxu0
  %v141 = vadd.f32 0.0, %v140
  %v142 = vpop.f32.mrf.mxu0
  %143 = vmatprep.mubr.f32.mxu0 0.0
  %144 = vmatmul.mubr.f32.gmra.mxu0 %v59
  %v145 = vpop.f32.mrf.mxu0
  %v146 = vadd.f32 0.0, %v145
  %v147 = vpop.f32.mrf.mxu0
  %148 = vmatprep.mubr.f32.mxu0 0.0
  %149 = vmatmul.mubr.f32.gmra.mxu0 %v62
  %v150 = vpop.f32.mrf.mxu0
  %v151 = vadd.f32 0.0, %v150
  %v152 = vpop.f32.mrf.mxu0
  %153 = vdwg.mxu0
  %v154 = vadd.f32 %v131, %v136
  %v155 = vadd.f32 %v154, %v141
  %v156 = vadd.f32 %v155, %v146
  %v157 = vadd.f32 %v156, %v151
  %v158 = vrot.slane %v157, 4
  %v159 = vadd.f32 %v157, %v158
  %v160 = vrot.slane %v159, 2
  %v161 = vadd.f32 %v159, %v160
  %v162 = vrot.slane %v161, 1
  %v163 = vadd.f32 %v161, %v162
  %165 = vrot.lane.b32.xlu0 %v163, 96
  %v166 = vpop.permute.xlu0 %165
  %v168 = vadd.f32 %v163, %v166
  %169 = vrot.lane.b32.xlu0 %v163, 64
  %v170 = vpop.permute.xlu0 %169
  %v172 = vadd.f32 %v168, %v170
  %173 = vrot.lane.b32.xlu0 %v163, 32
  %v174 = vpop.permute.xlu0 %173
  %v176 = vadd.f32 %v172, %v174
  %v177 = vmul.f32 %v176, 0.00625
  %179 = vrot.lane.b32.xlu0 %v177, 32
  %v180 = vpop.permute.xlu0 %179
  %182 = vrot.lane.b32.xlu0 %v177, 64
  %v183 = vpop.permute.xlu0 %182
  %185 = vrot.lane.b32.xlu0 %v177, 96
  %v186 = vpop.permute.xlu0 %185
  %vm188 = vcmask 261120
  %v189 = vsel %vm188, %v177, %v180
  %v190 = vsel %vm48, %v189, %v183
  %vm191 = vcmask 785408
  %v192 = vsel %vm191, %v190, %v186
  %v193 = vlaneseq
  %v194 = vshrl.u32 %v193, 7
  %v195 = vsub.s32 0, %v194
  %v196 = vrot.slane %v192, %v195
  %v197 = vsub.f32 %v131, %v196
  %v198 = vsub.f32 %v136, %v196
  %v199 = vsub.f32 %v141, %v196
  %v200 = vsub.f32 %v146, %v196
  %v201 = vsub.f32 %v151, %v196
  %v202 = vmul.f32 %v197, %v197
  %v203 = vmul.f32 %v198, %v198
  %v204 = vmul.f32 %v199, %v199
  %v205 = vmul.f32 %v200, %v200
  %v206 = vmul.f32 %v201, %v201
  %v207 = vadd.f32 %v202, %v203
  %v208 = vadd.f32 %v207, %v204
  %v209 = vadd.f32 %v208, %v205
  %v210 = vadd.f32 %v209, %v206
  %v211 = vrot.slane %v210, 4
  %v212 = vadd.f32 %v210, %v211
  %v213 = vrot.slane %v212, 2
  %v214 = vadd.f32 %v212, %v213
  %v215 = vrot.slane %v214, 1
  %v216 = vadd.f32 %v214, %v215
  %218 = vrot.lane.b32.xlu0 %v216, 96
  %v219 = vpop.permute.xlu0 %218
  %v221 = vadd.f32 %v216, %v219
  %222 = vrot.lane.b32.xlu0 %v216, 64
  %v223 = vpop.permute.xlu0 %222
  %v225 = vadd.f32 %v221, %v223
  %226 = vrot.lane.b32.xlu0 %v216, 32
  %v227 = vpop.permute.xlu0 %226
  %v229 = vadd.f32 %v225, %v227
  %v230 = vmul.f32 %v229, 0.00625
  %v231 = vmax.f32 %v230, 0.0
  %v232 = vld [vmem:[%s4] sm:$0x1]
  %v233 = vadd.f32 %v231, 1e-05
  %v234 = vrsqrt.pop %v233
  %v235 = vmul.f32 %v232, %v234
  %v236 = vld [vmem:[%s5] sm:$0x1]
  %v237 = vmul.f32 %v177, %v235
  %v238 = vsub.f32 %v236, %v237
  %v240 = vlaneseq
  %v241 = vshrl.u32 %v240, 7
  %v242 = vsub.s32 0, %v241
  %v243 = vrot.slane %v235, %v242
  %244 = vrot.lane.b32.xlu0 %v243, 32
  %v245 = vpop.permute.xlu0 %244
  %247 = vrot.lane.b32.xlu0 %v243, 64
  %v248 = vpop.permute.xlu0 %247
  %250 = vrot.lane.b32.xlu0 %v243, 96
  %v251 = vpop.permute.xlu0 %250
  %v253 = vsel %vm188, %v235, %v245
  %v254 = vsel %vm48, %v253, %v248
  %v255 = vsel %vm191, %v254, %v251
  %v256 = vlaneseq
  %v257 = vshrl.u32 %v256, 7
  %v258 = vsub.s32 0, %v257
  %v259 = vrot.slane %v255, %v258
  %v260 = vmul.f32 %v131, %v259
  %v261 = vmul.f32 %v136, %v259
  %v262 = vmul.f32 %v141, %v259
  %v263 = vmul.f32 %v146, %v259
  %v264 = vmul.f32 %v151, %v259
  %v266 = vlaneseq
  %v267 = vshrl.u32 %v266, 7
  %v268 = vsub.s32 0, %v267
  %v269 = vrot.slane %v238, %v268
  %270 = vrot.lane.b32.xlu0 %v269, 32
  %v271 = vpop.permute.xlu0 %270
  %273 = vrot.lane.b32.xlu0 %v269, 64
  %v274 = vpop.permute.xlu0 %273
  %276 = vrot.lane.b32.xlu0 %v269, 96
  %v277 = vpop.permute.xlu0 %276
  %v279 = vsel %vm188, %v238, %v271
  %v280 = vsel %vm48, %v279, %v274
  %v281 = vsel %vm191, %v280, %v277
  %v282 = vlaneseq
  %v283 = vshrl.u32 %v282, 7
  %v284 = vsub.s32 0, %v283
  %v285 = vrot.slane %v281, %v284
  %v286 = vadd.f32 %v260, %v285
  %v287 = vadd.f32 %v261, %v285
  %v288 = vadd.f32 %v262, %v285
  %v289 = vadd.f32 %v263, %v285
  %v290 = vadd.f32 %v264, %v285
  %v291 = vmax.f32 %v286, 0.0
  %v292 = vmax.f32 %v287, 0.0
  %v293 = vmax.f32 %v288, 0.0
  %v294 = vmax.f32 %v289, 0.0
  %v295 = vmax.f32 %v290, 0.0
  %v296 = vld [vmem:[%s2] sm:$0xff]
  %v297 = vld [vmem:[%s2 + $0x8] sm:$0xff]
  %v298 = vld [vmem:[%s2 + $0x10] sm:$0xff]
  %v299 = vld [vmem:[%s2 + $0x18] sm:$0xff]
  %v300 = vld [vmem:[%s2 + $0x20] sm:$0xff]
  %v301 = vld [vmem:[%s2 + $0x28] sm:$0xff]
  %v302 = vld [vmem:[%s2 + $0x30] sm:$0xff]
  %v303 = vld [vmem:[%s2 + $0x38] sm:$0xff]
  %v304 = vld [vmem:[%s2 + $0x40] sm:$0xff]
  %v305 = vld [vmem:[%s2 + $0x48] sm:$0xff]
  %v306 = vld [vmem:[%s2 + $0x50] sm:$0xff]
  %v307 = vld [vmem:[%s2 + $0x58] sm:$0xff]
  %v308 = vld [vmem:[%s2 + $0x60] sm:$0xff]
  %v309 = vld [vmem:[%s2 + $0x68] sm:$0xff]
  %v310 = vld [vmem:[%s2 + $0x70] sm:$0xff]
  %v311 = vld [vmem:[%s2 + $0x78] sm:$0xff]
  %v312 = vld [vmem:[%s2 + $0x80] sm:$0xff]
  %v313 = vld [vmem:[%s2 + $0x88] sm:$0xff]
  %v314 = vld [vmem:[%s2 + $0x90] sm:$0xff]
  %v315 = vld [vmem:[%s2 + $0x98] sm:$0xff]
  %v316 = vld [vmem:[%s2 + $0xa0] sm:$0xff]
  %v317 = vld [vmem:[%s2 + $0xa8] sm:$0xff]
  %v318 = vld [vmem:[%s2 + $0xb0] sm:$0xff]
  %v319 = vld [vmem:[%s2 + $0xb8] sm:$0xff]
  %v320 = vld [vmem:[%s2 + $0xc0] sm:$0xff]
  %v321 = vld [vmem:[%s2 + $0xc8] sm:$0xff]
  %v322 = vld [vmem:[%s2 + $0xd0] sm:$0xff]
  %v323 = vld [vmem:[%s2 + $0xd8] sm:$0xff]
  %v324 = vld [vmem:[%s2 + $0xe0] sm:$0xff]
  %v325 = vld [vmem:[%s2 + $0xe8] sm:$0xff]
  %v326 = vld [vmem:[%s2 + $0xf0] sm:$0xff]
  %v327 = vld [vmem:[%s2 + $0xf8] sm:$0xff]
  %328 = vmatprep.subr.mxu0 %v327
  %329 = vmatpush1.msra.mxu0 %v326
  %330 = vmatprep.subr.mxu0 %v325
  %331 = vmatpush1.msra.mxu0 %v324
  %332 = vmatprep.subr.mxu0 %v323
  %333 = vmatpush1.msra.mxu0 %v322
  %334 = vmatprep.subr.mxu0 %v321
  %335 = vmatpush1.msra.mxu0 %v320
  %336 = vmatprep.subr.mxu0 %v319
  %337 = vmatpush1.msra.mxu0 %v318
  %338 = vmatprep.subr.mxu0 %v317
  %339 = vmatpush1.msra.mxu0 %v316
  %340 = vmatprep.subr.mxu0 %v315
  %341 = vmatpush1.msra.mxu0 %v314
  %342 = vmatprep.subr.mxu0 %v313
  %343 = vmatpush1.msra.mxu0 %v312
  %344 = vmatprep.subr.mxu0 %v311
  %345 = vmatpush1.msra.mxu0 %v310
  %346 = vmatprep.subr.mxu0 %v309
  %347 = vmatpush1.msra.mxu0 %v308
  %348 = vmatprep.subr.mxu0 %v307
  %349 = vmatpush1.msra.mxu0 %v306
  %350 = vmatprep.subr.mxu0 %v305
  %351 = vmatpush1.msra.mxu0 %v304
  %352 = vmatprep.subr.mxu0 %v303
  %353 = vmatpush1.msra.mxu0 %v302
  %354 = vmatprep.subr.mxu0 %v301
  %355 = vmatpush1.msra.mxu0 %v300
  %356 = vmatprep.subr.mxu0 %v299
  %357 = vmatpush1.msra.mxu0 %v298
  %358 = vmatprep.subr.mxu0 %v297
  %359 = vmatpush1.msra.mxu0 %v296
  %360 = vmatprep.subr.mxu0 0.0
  %361 = vmatpush2.msra.mxu0 0.0
  %362 = vmatprep.subr.mxu0 0.0
  %363 = vmatpush2.msra.mxu0 0.0
  %364 = vmatprep.subr.mxu0 0.0
  %365 = vmatpush2.msra.mxu0 0.0
  %366 = vmatprep.subr.mxu0 0.0
  %367 = vmatpush2.msra.mxu0 0.0
  %368 = vmatprep.subr.mxu0 0.0
  %369 = vmatpush2.msra.mxu0 0.0
  %370 = vmatprep.subr.mxu0 0.0
  %371 = vmatpush2.msra.mxu0 0.0
  %372 = vmatprep.subr.mxu0 0.0
  %373 = vmatpush2.msra.mxu0 0.0
  %374 = vmatprep.subr.mxu0 0.0
  %375 = vmatpush2.msra.mxu0 0.0
  %376 = vmatprep.subr.mxu0 0.0
  %377 = vmatpush2.msra.mxu0 0.0
  %378 = vmatprep.subr.mxu0 0.0
  %379 = vmatpush2.msra.mxu0 0.0
  %380 = vmatprep.subr.mxu0 0.0
  %381 = vmatpush2.msra.mxu0 0.0
  %382 = vmatprep.subr.mxu0 0.0
  %383 = vmatpush2.msra.mxu0 0.0
  %384 = vmatprep.subr.mxu0 0.0
  %385 = vmatpush2.msra.mxu0 0.0
  %386 = vmatprep.subr.mxu0 0.0
  %387 = vmatpush2.msra.mxu0 0.0
  %388 = vmatprep.subr.mxu0 0.0
  %389 = vmatpush2.msra.mxu0 0.0
  %390 = vmatprep.subr.mxu0 0.0
  %391 = vmatpush2.msra.mxu0 0.0
  %392 = vmatprep.mubr.f32.mxu0 0.0
  %393 = vmatmul.mubr.f32.gmra.mxu0 %v291
  %v394 = vpop.f32.mrf.mxu0
  %v395 = vadd.f32 0.0, %v394
  %v396 = vpop.f32.mrf.mxu0
  %v397 = vadd.f32 0.0, %v396
  %398 = vmatprep.mubr.f32.mxu0 0.0
  %399 = vmatmul.mubr.f32.gmra.mxu0 %v292
  %v400 = vpop.f32.mrf.mxu0
  %v401 = vadd.f32 0.0, %v400
  %v402 = vpop.f32.mrf.mxu0
  %v403 = vadd.f32 0.0, %v402
  %404 = vmatprep.mubr.f32.mxu0 0.0
  %405 = vmatmul.mubr.f32.gmra.mxu0 %v293
  %v406 = vpop.f32.mrf.mxu0
  %v407 = vadd.f32 0.0, %v406
  %v408 = vpop.f32.mrf.mxu0
  %v409 = vadd.f32 0.0, %v408
  %410 = vmatprep.mubr.f32.mxu0 0.0
  %411 = vmatmul.mubr.f32.gmra.mxu0 %v294
  %v412 = vpop.f32.mrf.mxu0
  %v413 = vadd.f32 0.0, %v412
  %v414 = vpop.f32.mrf.mxu0
  %v415 = vadd.f32 0.0, %v414
  %416 = vmatprep.mubr.f32.mxu0 0.0
  %417 = vmatmul.mubr.f32.gmra.mxu0 %v295
  %v418 = vpop.f32.mrf.mxu0
  %v419 = vadd.f32 0.0, %v418
  %v420 = vpop.f32.mrf.mxu0
  %v421 = vadd.f32 0.0, %v420
  %422 = vdwg.mxu0
  %v423 = vadd.f32 %v395, %v401
  %v424 = vadd.f32 %v423, %v407
  %v425 = vadd.f32 %v424, %v413
  %v426 = vadd.f32 %v425, %v419
  %v427 = vrot.slane %v426, 4
  %v428 = vadd.f32 %v426, %v427
  %v429 = vrot.slane %v428, 2
  %v430 = vadd.f32 %v428, %v429
  %v431 = vrot.slane %v430, 1
  %v432 = vadd.f32 %v430, %v431
  %v433 = vadd.f32 %v397, %v403
  %v434 = vadd.f32 %v433, %v409
  %v435 = vadd.f32 %v434, %v415
  %v436 = vadd.f32 %v435, %v421
  %v437 = vrot.slane %v436, 4
  %v438 = vadd.f32 %v436, %v437
  %v439 = vrot.slane %v438, 2
  %v440 = vadd.f32 %v438, %v439
  %v441 = vrot.slane %v440, 1
  %v442 = vadd.f32 %v440, %v441
  %444 = vrot.lane.b32.xlu0 %v432, 64
  %v445 = vpop.permute.xlu0 %444
  %v447 = vadd.f32 %v432, %v445
  %v448 = vadd.f32 %v447, %v442
  %450 = vrot.lane.b32.xlu0 %v442, 64
  %v451 = vpop.permute.xlu0 %450
  %v453 = vadd.f32 %v448, %v451
  %v454 = vmul.f32 %v453, 0.00625
  %456 = vrot.lane.b32.xlu0 %v454, 64
  %v457 = vpop.permute.xlu0 %456
  %v459 = vsel %vm48, %v454, %v457
  %v460 = vlaneseq
  %v461 = vshrl.u32 %v460, 7
  %v462 = vsub.s32 0, %v461
  %v463 = vrot.slane %v459, %v462
  %v464 = vsub.f32 %v395, %v463
  %v465 = vsub.f32 %v397, %v463
  %v466 = vsub.f32 %v401, %v463
  %v467 = vsub.f32 %v403, %v463
  %v468 = vsub.f32 %v407, %v463
  %v469 = vsub.f32 %v409, %v463
  %v470 = vsub.f32 %v413, %v463
  %v471 = vsub.f32 %v415, %v463
  %v472 = vsub.f32 %v419, %v463
  %v473 = vsub.f32 %v421, %v463
  %v474 = vmul.f32 %v464, %v464
  %v475 = vmul.f32 %v465, %v465
  %v476 = vmul.f32 %v466, %v466
  %v477 = vmul.f32 %v467, %v467
  %v478 = vmul.f32 %v468, %v468
  %v479 = vmul.f32 %v469, %v469
  %v480 = vmul.f32 %v470, %v470
  %v481 = vmul.f32 %v471, %v471
  %v482 = vmul.f32 %v472, %v472
  %v483 = vmul.f32 %v473, %v473
  %v484 = vadd.f32 %v474, %v476
  %v485 = vadd.f32 %v484, %v478
  %v486 = vadd.f32 %v485, %v480
  %v487 = vadd.f32 %v486, %v482
  %v488 = vrot.slane %v487, 4
  %v489 = vadd.f32 %v487, %v488
  %v490 = vrot.slane %v489, 2
  %v491 = vadd.f32 %v489, %v490
  %v492 = vrot.slane %v491, 1
  %v493 = vadd.f32 %v491, %v492
  %v494 = vadd.f32 %v475, %v477
  %v495 = vadd.f32 %v494, %v479
  %v496 = vadd.f32 %v495, %v481
  %v497 = vadd.f32 %v496, %v483
  %v498 = vrot.slane %v497, 4
  %v499 = vadd.f32 %v497, %v498
  %v500 = vrot.slane %v499, 2
  %v501 = vadd.f32 %v499, %v500
  %v502 = vrot.slane %v501, 1
  %v503 = vadd.f32 %v501, %v502
  %505 = vrot.lane.b32.xlu0 %v493, 64
  %v506 = vpop.permute.xlu0 %505
  %v508 = vadd.f32 %v493, %v506
  %v509 = vadd.f32 %v508, %v503
  %511 = vrot.lane.b32.xlu0 %v503, 64
  %v512 = vpop.permute.xlu0 %511
  %v514 = vadd.f32 %v509, %v512
  %v515 = vmul.f32 %v514, 0.00625
  %v516 = vmax.f32 %v515, 0.0
  %v517 = vld [vmem:[%s6] sm:$0x1]
  %v518 = vadd.f32 %v516, 1e-05
  %v519 = vrsqrt.pop %v518
  %v520 = vmul.f32 %v517, %v519
  %v521 = vld [vmem:[%s7] sm:$0x1]
  %v522 = vmul.f32 %v454, %v520
  %v523 = vsub.f32 %v521, %v522
  %v525 = vlaneseq
  %v526 = vshrl.u32 %v525, 7
  %v527 = vsub.s32 0, %v526
  %v528 = vrot.slane %v520, %v527
  %529 = vrot.lane.b32.xlu0 %v528, 64
  %v530 = vpop.permute.xlu0 %529
  %v532 = vsel %vm48, %v520, %v530
  %v533 = vlaneseq
  %v534 = vshrl.u32 %v533, 7
  %v535 = vsub.s32 0, %v534
  %v536 = vrot.slane %v532, %v535
  %v537 = vmul.f32 %v395, %v536
  %v538 = vmul.f32 %v397, %v536
  %v539 = vmul.f32 %v401, %v536
  %v540 = vmul.f32 %v403, %v536
  %v541 = vmul.f32 %v407, %v536
  %v542 = vmul.f32 %v409, %v536
  %v543 = vmul.f32 %v413, %v536
  %v544 = vmul.f32 %v415, %v536
  %v545 = vmul.f32 %v419, %v536
  %v546 = vmul.f32 %v421, %v536
  %v548 = vlaneseq
  %v549 = vshrl.u32 %v548, 7
  %v550 = vsub.s32 0, %v549
  %v551 = vrot.slane %v523, %v550
  %552 = vrot.lane.b32.xlu0 %v551, 64
  %v553 = vpop.permute.xlu0 %552
  %v555 = vsel %vm48, %v523, %v553
  %v556 = vlaneseq
  %v557 = vshrl.u32 %v556, 7
  %v558 = vsub.s32 0, %v557
  %v559 = vrot.slane %v555, %v558
  %v560 = vadd.f32 %v537, %v559
  %v561 = vadd.f32 %v538, %v559
  %v562 = vadd.f32 %v539, %v559
  %v563 = vadd.f32 %v540, %v559
  %v564 = vadd.f32 %v541, %v559
  %v565 = vadd.f32 %v542, %v559
  %v566 = vadd.f32 %v543, %v559
  %v567 = vadd.f32 %v544, %v559
  %v568 = vadd.f32 %v545, %v559
  %v569 = vadd.f32 %v546, %v559
  %v570 = vmax.f32 %v560, 0.0
  %v571 = vmax.f32 %v561, 0.0
  %v572 = vmax.f32 %v562, 0.0
  %v573 = vmax.f32 %v563, 0.0
  %v574 = vmax.f32 %v564, 0.0
  %v575 = vmax.f32 %v565, 0.0
  %v576 = vmax.f32 %v566, 0.0
  %v577 = vmax.f32 %v567, 0.0
  %v578 = vmax.f32 %v568, 0.0
  %v579 = vmax.f32 %v569, 0.0
  %v580 = vld [vmem:[%s3] sm:$0xff]
  %v581 = vld [vmem:[%s3 + $0x8] sm:$0xff]
  %v582 = vld [vmem:[%s3 + $0x10] sm:$0xff]
  %v583 = vld [vmem:[%s3 + $0x18] sm:$0xff]
  %v584 = vld [vmem:[%s3 + $0x20] sm:$0xff]
  %v585 = vld [vmem:[%s3 + $0x28] sm:$0xff]
  %v586 = vld [vmem:[%s3 + $0x30] sm:$0xff]
  %v587 = vld [vmem:[%s3 + $0x38] sm:$0xff]
  %v588 = vld [vmem:[%s3 + $0x40] sm:$0xff]
  %v589 = vld [vmem:[%s3 + $0x48] sm:$0xff]
  %v590 = vld [vmem:[%s3 + $0x50] sm:$0xff]
  %v591 = vld [vmem:[%s3 + $0x58] sm:$0xff]
  %v592 = vld [vmem:[%s3 + $0x60] sm:$0xff]
  %v593 = vld [vmem:[%s3 + $0x68] sm:$0xff]
  %v594 = vld [vmem:[%s3 + $0x70] sm:$0xff]
  %v595 = vld [vmem:[%s3 + $0x78] sm:$0xff]
  %v596 = vld [vmem:[%s3 + $0x80] sm:$0xff]
  %v597 = vld [vmem:[%s3 + $0x88] sm:$0xff]
  %v598 = vld [vmem:[%s3 + $0x90] sm:$0xff]
  %v599 = vld [vmem:[%s3 + $0x98] sm:$0xff]
  %v600 = vld [vmem:[%s3 + $0xa0] sm:$0xff]
  %v601 = vld [vmem:[%s3 + $0xa8] sm:$0xff]
  %v602 = vld [vmem:[%s3 + $0xb0] sm:$0xff]
  %v603 = vld [vmem:[%s3 + $0xb8] sm:$0xff]
  %v604 = vld [vmem:[%s3 + $0xc0] sm:$0xff]
  %v605 = vld [vmem:[%s3 + $0xc8] sm:$0xff]
  %v606 = vld [vmem:[%s3 + $0xd0] sm:$0xff]
  %v607 = vld [vmem:[%s3 + $0xd8] sm:$0xff]
  %v608 = vld [vmem:[%s3 + $0xe0] sm:$0xff]
  %v609 = vld [vmem:[%s3 + $0xe8] sm:$0xff]
  %v610 = vld [vmem:[%s3 + $0xf0] sm:$0xff]
  %v611 = vld [vmem:[%s3 + $0xf8] sm:$0xff]
  %612 = vmatprep.subr.mxu0 0.0
  %613 = vmatpush1.msra.mxu0 %v595
  %614 = vmatprep.subr.mxu0 0.0
  %615 = vmatpush1.msra.mxu0 %v594
  %616 = vmatprep.subr.mxu0 0.0
  %617 = vmatpush1.msra.mxu0 %v593
  %618 = vmatprep.subr.mxu0 0.0
  %619 = vmatpush1.msra.mxu0 %v592
  %620 = vmatprep.subr.mxu0 0.0
  %621 = vmatpush1.msra.mxu0 %v591
  %622 = vmatprep.subr.mxu0 0.0
  %623 = vmatpush1.msra.mxu0 %v590
  %624 = vmatprep.subr.mxu0 0.0
  %625 = vmatpush1.msra.mxu0 %v589
  %626 = vmatprep.subr.mxu0 0.0
  %627 = vmatpush1.msra.mxu0 %v588
  %628 = vmatprep.subr.mxu0 0.0
  %629 = vmatpush1.msra.mxu0 %v587
  %630 = vmatprep.subr.mxu0 0.0
  %631 = vmatpush1.msra.mxu0 %v586
  %632 = vmatprep.subr.mxu0 0.0
  %633 = vmatpush1.msra.mxu0 %v585
  %634 = vmatprep.subr.mxu0 0.0
  %635 = vmatpush1.msra.mxu0 %v584
  %636 = vmatprep.subr.mxu0 0.0
  %637 = vmatpush1.msra.mxu0 %v583
  %638 = vmatprep.subr.mxu0 0.0
  %639 = vmatpush1.msra.mxu0 %v582
  %640 = vmatprep.subr.mxu0 0.0
  %641 = vmatpush1.msra.mxu0 %v581
  %642 = vmatprep.subr.mxu0 0.0
  %643 = vmatpush1.msra.mxu0 %v580
  %644 = vmatprep.subr.mxu0 0.0
  %645 = vmatpush2.msra.mxu0 %v611
  %646 = vmatprep.subr.mxu0 0.0
  %647 = vmatpush2.msra.mxu0 %v610
  %648 = vmatprep.subr.mxu0 0.0
  %649 = vmatpush2.msra.mxu0 %v609
  %650 = vmatprep.subr.mxu0 0.0
  %651 = vmatpush2.msra.mxu0 %v608
  %652 = vmatprep.subr.mxu0 0.0
  %653 = vmatpush2.msra.mxu0 %v607
  %654 = vmatprep.subr.mxu0 0.0
  %655 = vmatpush2.msra.mxu0 %v606
  %656 = vmatprep.subr.mxu0 0.0
  %657 = vmatpush2.msra.mxu0 %v605
  %658 = vmatprep.subr.mxu0 0.0
  %659 = vmatpush2.msra.mxu0 %v604
  %660 = vmatprep.subr.mxu0 0.0
  %661 = vmatpush2.msra.mxu0 %v603
  %662 = vmatprep.subr.mxu0 0.0
  %663 = vmatpush2.msra.mxu0 %v602
  %664 = vmatprep.subr.mxu0 0.0
  %665 = vmatpush2.msra.mxu0 %v601
  %666 = vmatprep.subr.mxu0 0.0
  %667 = vmatpush2.msra.mxu0 %v600
  %668 = vmatprep.subr.mxu0 0.0
  %669 = vmatpush2.msra.mxu0 %v599
  %670 = vmatprep.subr.mxu0 0.0
  %671 = vmatpush2.msra.mxu0 %v598
  %672 = vmatprep.subr.mxu0 0.0
  %673 = vmatpush2.msra.mxu0 %v597
  %674 = vmatprep.subr.mxu0 0.0
  %675 = vmatpush2.msra.mxu0 %v596
  %676 = vmatprep.mubr.f32.mxu0 %v571
  %677 = vmatmul.mubr.f32.gmra.mxu0 %v570
  %v678 = vpop.f32.mrf.mxu0
  %v679 = vadd.f32 0.0, %v678
  %v680 = vpop.f32.mrf.mxu0
  %681 = vmatprep.mubr.f32.mxu0 %v573
  %682 = vmatmul.mubr.f32.gmra.mxu0 %v572
  %v683 = vpop.f32.mrf.mxu0
  %v684 = vadd.f32 0.0, %v683
  %v685 = vpop.f32.mrf.mxu0
  %686 = vmatprep.mubr.f32.mxu0 %v575
  %687 = vmatmul.mubr.f32.gmra.mxu0 %v574
  %v688 = vpop.f32.mrf.mxu0
  %v689 = vadd.f32 0.0, %v688
  %v690 = vpop.f32.mrf.mxu0
  %691 = vmatprep.mubr.f32.mxu0 %v577
  %692 = vmatmul.mubr.f32.gmra.mxu0 %v576
  %v693 = vpop.f32.mrf.mxu0
  %v694 = vadd.f32 0.0, %v693
  %v695 = vpop.f32.mrf.mxu0
  %696 = vmatprep.mubr.f32.mxu0 %v579
  %697 = vmatmul.mubr.f32.gmra.mxu0 %v578
  %v698 = vpop.f32.mrf.mxu0
  %v699 = vadd.f32 0.0, %v698
  %v700 = vpop.f32.mrf.mxu0
  %701 = vdwg.mxu0
  %v702 = vadd.f32 %v679, %v684
  %v703 = vadd.f32 %v702, %v689
  %v704 = vadd.f32 %v703, %v694
  %v705 = vadd.f32 %v704, %v699
  %v706 = vrot.slane %v705, 4
  %v707 = vadd.f32 %v705, %v706
  %v708 = vrot.slane %v707, 2
  %v709 = vadd.f32 %v707, %v708
  %v710 = vrot.slane %v709, 1
  %v711 = vadd.f32 %v709, %v710
  %713 = vrot.lane.b32.xlu0 %v711, 96
  %v714 = vpop.permute.xlu0 %713
  %v716 = vadd.f32 %v711, %v714
  %717 = vrot.lane.b32.xlu0 %v711, 64
  %v718 = vpop.permute.xlu0 %717
  %v720 = vadd.f32 %v716, %v718
  %721 = vrot.lane.b32.xlu0 %v711, 32
  %v722 = vpop.permute.xlu0 %721
  %v724 = vadd.f32 %v720, %v722
  %v725 = vmul.f32 %v724, 0.00625
  %727 = vrot.lane.b32.xlu0 %v725, 32
  %v728 = vpop.permute.xlu0 %727
  %730 = vrot.lane.b32.xlu0 %v725, 64
  %v731 = vpop.permute.xlu0 %730
  %733 = vrot.lane.b32.xlu0 %v725, 96
  %v734 = vpop.permute.xlu0 %733
  %v736 = vsel %vm188, %v725, %v728
  %v737 = vsel %vm48, %v736, %v731
  %v738 = vsel %vm191, %v737, %v734
  %v739 = vlaneseq
  %v740 = vshrl.u32 %v739, 7
  %v741 = vsub.s32 0, %v740
  %v742 = vrot.slane %v738, %v741
  %v743 = vsub.f32 %v679, %v742
  %v744 = vsub.f32 %v684, %v742
  %v745 = vsub.f32 %v689, %v742
  %v746 = vsub.f32 %v694, %v742
  %v747 = vsub.f32 %v699, %v742
  %v748 = vmul.f32 %v743, %v743
  %v749 = vmul.f32 %v744, %v744
  %v750 = vmul.f32 %v745, %v745
  %v751 = vmul.f32 %v746, %v746
  %v752 = vmul.f32 %v747, %v747
  %v753 = vadd.f32 %v748, %v749
  %v754 = vadd.f32 %v753, %v750
  %v755 = vadd.f32 %v754, %v751
  %v756 = vadd.f32 %v755, %v752
  %v757 = vrot.slane %v756, 4
  %v758 = vadd.f32 %v756, %v757
  %v759 = vrot.slane %v758, 2
  %v760 = vadd.f32 %v758, %v759
  %v761 = vrot.slane %v760, 1
  %v762 = vadd.f32 %v760, %v761
  %764 = vrot.lane.b32.xlu0 %v762, 96
  %v765 = vpop.permute.xlu0 %764
  %v767 = vadd.f32 %v762, %v765
  %768 = vrot.lane.b32.xlu0 %v762, 64
  %v769 = vpop.permute.xlu0 %768
  %v771 = vadd.f32 %v767, %v769
  %772 = vrot.lane.b32.xlu0 %v762, 32
  %v773 = vpop.permute.xlu0 %772
  %v775 = vadd.f32 %v771, %v773
  %v776 = vmul.f32 %v775, 0.00625
  %v777 = vmax.f32 %v776, 0.0
  %v778 = vld [vmem:[%s8] sm:$0x1]
  %v779 = vadd.f32 %v777, 1e-05
  %v780 = vrsqrt.pop %v779
  %v781 = vmul.f32 %v778, %v780
  %v782 = vld [vmem:[%s9] sm:$0x1]
  %v783 = vmul.f32 %v725, %v781
  %v784 = vsub.f32 %v782, %v783
  %v786 = vlaneseq
  %v787 = vshrl.u32 %v786, 7
  %v788 = vsub.s32 0, %v787
  %v789 = vrot.slane %v781, %v788
  %790 = vrot.lane.b32.xlu0 %v789, 32
  %v791 = vpop.permute.xlu0 %790
  %793 = vrot.lane.b32.xlu0 %v789, 64
  %v794 = vpop.permute.xlu0 %793
  %796 = vrot.lane.b32.xlu0 %v789, 96
  %v797 = vpop.permute.xlu0 %796
  %v799 = vsel %vm188, %v781, %v791
  %v800 = vsel %vm48, %v799, %v794
  %v801 = vsel %vm191, %v800, %v797
  %v802 = vlaneseq
  %v803 = vshrl.u32 %v802, 7
  %v804 = vsub.s32 0, %v803
  %v805 = vrot.slane %v801, %v804
  %v806 = vmul.f32 %v679, %v805
  %v807 = vmul.f32 %v684, %v805
  %v808 = vmul.f32 %v689, %v805
  %v809 = vmul.f32 %v694, %v805
  %v810 = vmul.f32 %v699, %v805
  %v812 = vlaneseq
  %v813 = vshrl.u32 %v812, 7
  %v814 = vsub.s32 0, %v813
  %v815 = vrot.slane %v784, %v814
  %816 = vrot.lane.b32.xlu0 %v815, 32
  %v817 = vpop.permute.xlu0 %816
  %819 = vrot.lane.b32.xlu0 %v815, 64
  %v820 = vpop.permute.xlu0 %819
  %822 = vrot.lane.b32.xlu0 %v815, 96
  %v823 = vpop.permute.xlu0 %822
  %v825 = vsel %vm188, %v784, %v817
  %v826 = vsel %vm48, %v825, %v820
  %v827 = vsel %vm191, %v826, %v823
  %v828 = vlaneseq
  %v829 = vshrl.u32 %v828, 7
  %v830 = vsub.s32 0, %v829
  %v831 = vrot.slane %v827, %v830
  %v832 = vadd.f32 %v806, %v831
  %v833 = vadd.f32 %v807, %v831
  %v834 = vadd.f32 %v808, %v831
  %v835 = vadd.f32 %v809, %v831
  %v836 = vadd.f32 %v810, %v831
  %v837 = vmax.f32 %v832, 0.0
  %v838 = vmax.f32 %v833, 0.0
  %v839 = vmax.f32 %v834, 0.0
  %v840 = vmax.f32 %v835, 0.0
  %v841 = vmax.f32 %v836, 0.0
  %842 = vst [vmem:[%s10] sm:$0xff] %v837
  %843 = vst [vmem:[%s10 + $0x8] sm:$0xff] %v838
  %844 = vst [vmem:[%s10 + $0x10] sm:$0xff] %v839
  %845 = vst [vmem:[%s10 + $0x18] sm:$0xff] %v840
  %846 = vst [vmem:[%s10 + $0x20] sm:$0xff] %v841
  // Predicated region
  $region42: #{_lambda_.1} parent=0 // pred_check
    _
  $region43: #{_lambda_.1} parent=0 // pred_check_branch
    %848 = sbr.rel (0) target = $region45
  $region44: #{_lambda_.1} parent=0 // pred_region
    _
  $region45: #{_lambda_.1} parent=0 // pred_fallthru
    _
  // Predicated region
  $region46: #{_lambda_.1} parent=0 // pred_check
    _
  $region47: #{_lambda_.1} parent=0 // pred_check_branch
    %850 = sbr.rel (0) target = $region49
  $region48: #{_lambda_.1} parent=0 // pred_region
    _
  $region49: #{_lambda_.1} parent=0 // pred_fallthru
    _

</llo_original>
